<compile_context>
chip_gen: v7x
topology: tpu7x:2x2x1
jax: 0.10.0
libtpu: 0.0.40
codegen_flags: <defaults>
</compile_context>

<pallas_src>
import functools

import jax
import jax.numpy as jnp
from jax.experimental import pallas as pl
from jax.experimental.pallas import tpu as pltpu

_LANES = 128  # lane-dense padded class / slab width


def _round_up(n, m):
    return (n + m - 1) // m * m


def _slab_offsets(E, H):
    """Row offsets (all multiples of 8) of each operand inside the weight slab."""
    r_wih = 0
    r_whh = r_wih + _round_up(E, 8)
    r_b = r_whh + _round_up(H, 8)
    r_wfc = r_b + 8
    r_bfc = r_wfc + _round_up(H, 8)
    r_tot = r_bfc + 8
    return r_wih, r_whh, r_b, r_wfc, r_bfc, r_tot


def pack_weights(w_ih, w_hh, b_ih, b_hh, w_fc, b_fc):
    """Pack all static parameters into one (rows, 128) f32 slab (built once)."""
    H, E = w_ih.shape
    C = w_fc.shape[0]
    r_wih, r_whh, r_b, r_wfc, r_bfc, r_tot = _slab_offsets(E, H)

    slab = jnp.zeros((r_tot, _LANES), jnp.float32)
    slab = slab.at[r_wih:r_wih + E, :H].set(w_ih.T.astype(jnp.float32))
    slab = slab.at[r_whh:r_whh + H, :H].set(w_hh.T.astype(jnp.float32))
    slab = slab.at[r_b, :H].set((b_ih + b_hh).astype(jnp.float32))
    slab = slab.at[r_wfc:r_wfc + H, :C].set(w_fc.T.astype(jnp.float32))
    # Padded-class bias: -1e30 in lanes [C,128) -> exp underflows to 0 in f32.
    slab = slab.at[r_bfc, :].set(-1e30)
    slab = slab.at[r_bfc, :C].set(b_fc.astype(jnp.float32))
    return slab


def _rnn_kernel(x_ref, w_ref, out_ref, *, Bp, T, E, H):
    r_wih, r_whh, r_b, r_wfc, r_bfc, _ = _slab_offsets(E, H)

    w = w_ref[...]                                   # (rows, 128) slab
    wih = w[r_wih:r_wih + E, :H]                     # (E, H)   prefix slices:
    whh = w[r_whh:r_whh + H, :H]                     # (H, H)   row starts are
    b = w[r_b:r_b + 1, :H]                           # (1, H)   multiples of 8,
    wfc = w[r_wfc:r_wfc + H, :]                      # (H, 128) lanes are a prefix
    bfc = w[r_bfc:r_bfc + 1, :]                      # (1, 128)

    # Hoisted (non-recurrent) input projection for all timesteps at once:
    #   xw[t*Bp + b, :] = x[b, t, :] @ Wih^T + (b_ih + b_hh)
    xw = jnp.dot(x_ref[...], wih, preferred_element_type=jnp.float32) + b  # (T*Bp, H)

    h = jnp.zeros((Bp, H), jnp.float32)
    # Fully unrolled recurrence (T is a small static constant). Only h@Whh and
    # tanh sit on the serial critical path; all xw slices are (8,*) aligned.
    # TODO(synk): for large T use lax.fori_loop(..., unroll=True); consider
    # pltpu.matmul_push_rhs/matmul_acc_lhs to keep Whh staged in the MXU.
    for t in range(T):
        h = jnp.tanh(xw[t * Bp:(t + 1) * Bp, :]
                     + jnp.dot(h, whh, preferred_element_type=jnp.float32))

    # Classifier head + log-softmax over the lane-dense padded class dim.
    logits = jnp.dot(h, wfc, preferred_element_type=jnp.float32) + bfc      # (Bp, 128)
    m = jnp.max(logits, axis=1, keepdims=True)
    z = logits - m
    lse = jnp.log(jnp.sum(jnp.exp(z), axis=1, keepdims=True))
    out_ref[...] = (z - lse).astype(out_ref.dtype)                          # full (8,128) store


def rnn_forward(x, w_slab, *, H, C):
    """x: (B, T, E) float32, w_slab from pack_weights. Returns log-probs (B, C)."""
    B, T, E = x.shape
    Bp = max(8, _round_up(B, 8))        # sublane-aligned batch

    # Per-call glue: batch-pad + time-major flatten (one tiny fusion under jit).
    xt = jnp.transpose(x.astype(jnp.float32), (1, 0, 2))        # (T, B, E)
    xt = jnp.pad(xt, ((0, 0), (0, Bp - B), (0, 0)))             # (T, Bp, E)
    xp = xt.reshape(T * Bp, E)                                  # (T*Bp, E)

    vmem_spec = pl.BlockSpec(memory_space=pltpu.MemorySpace.VMEM)
    out_padded = pl.pallas_call(
        functools.partial(_rnn_kernel, Bp=Bp, T=T, E=E, H=H),
        out_shape=jax.ShapeDtypeStruct((Bp, _LANES), jnp.float32),
        in_specs=[vmem_spec, vmem_spec],     # 2 DMAs: x slab + weight slab
        out_specs=vmem_spec,
    )(xp, w_slab)

    return out_padded[:B, :C]


def rnn_reference(x, w_ih, w_hh, b_ih, b_hh, w_fc, b_fc):
    B, T, E = x.shape
    H = w_ih.shape[0]
    h = jnp.zeros((B, H), jnp.float32)
    for t in range(T):
        h = jnp.tanh(x[:, t, :] @ w_ih.T + b_ih + h @ w_hh.T + b_hh)
    logits = h @ w_fc.T + b_fc
    return jax.nn.log_softmax(logits, axis=1)


if __name__ == "__main__":
    B, T, E, H, C = 2, 8, 16, 32, 5

    key = jax.random.PRNGKey(0)
    ks = jax.random.split(key, 7)
    bound = 1.0 / jnp.sqrt(H)  # PyTorch-style uniform init scale

    x = jax.random.normal(ks[0], (B, T, E), jnp.float32)
    w_ih = jax.random.uniform(ks[1], (H, E), jnp.float32, -bound, bound)
    w_hh = jax.random.uniform(ks[2], (H, H), jnp.float32, -bound, bound)
    b_ih = jax.random.uniform(ks[3], (H,), jnp.float32, -bound, bound)
    b_hh = jax.random.uniform(ks[4], (H,), jnp.float32, -bound, bound)
    w_fc = jax.random.uniform(ks[5], (C, H), jnp.float32, -bound, bound)
    b_fc = jax.random.uniform(ks[6], (C,), jnp.float32, -bound, bound)

    # Static prep, done once per model (cached across calls).
    w_slab = jax.block_until_ready(pack_weights(w_ih, w_hh, b_ih, b_hh, w_fc, b_fc))

    # Per-call path: jitted so the x-prep glue fuses; weight slab is a constant.
    fwd = jax.jit(lambda xx: rnn_forward(xx, w_slab, H=H, C=C))

    out = jax.block_until_ready(fwd(x))

    ref = rnn_reference(x, w_ih, w_hh, b_ih, b_hh, w_fc, b_fc)
    assert out.shape == (B, C)
    assert jnp.allclose(out, ref, atol=1e-5, rtol=1e-5), (out, ref)

    print("KERNEL_OK")
</pallas_src>

<mosaic_0001>
module attributes {stable_mosaic.version = 11 : i64} {
  func.func @_rnn_kernel(%arg0: memref<64x16xf32, #tpu.memory_space<vmem>>, %arg1: memref<96x128xf32, #tpu.memory_space<vmem>>, %arg2: memref<8x128xf32, #tpu.memory_space<vmem>>) attributes {dimension_semantics = [], scalar_prefetch = 0 : i64, scratch_operands = 0 : i64, tpu.core_type = #tpu.core_type<tc>} {
    %c0 = arith.constant 0 : index
    %c0_0 = arith.constant 0 : index
    %0 = vector.load %arg1[%c0, %c0_0] : memref<96x128xf32, #tpu.memory_space<vmem>>, vector<96x128xf32>
    %1 = vector.extract_strided_slice %0 {offsets = [0, 0], sizes = [16, 32], strides = [1, 1]} : vector<96x128xf32> to vector<16x32xf32>
    %2 = vector.extract_strided_slice %0 {offsets = [16, 0], sizes = [32, 32], strides = [1, 1]} : vector<96x128xf32> to vector<32x32xf32>
    %3 = vector.extract_strided_slice %0 {offsets = [48, 0], sizes = [1, 32], strides = [1, 1]} : vector<96x128xf32> to vector<1x32xf32>
    %4 = vector.extract_strided_slice %0 {offsets = [56, 0], sizes = [32, 128], strides = [1, 1]} : vector<96x128xf32> to vector<32x128xf32>
    %5 = vector.extract_strided_slice %0 {offsets = [88, 0], sizes = [1, 128], strides = [1, 1]} : vector<96x128xf32> to vector<1x128xf32>
    %c0_1 = arith.constant 0 : index
    %c0_2 = arith.constant 0 : index
    %6 = vector.load %arg0[%c0_1, %c0_2] : memref<64x16xf32, #tpu.memory_space<vmem>>, vector<64x16xf32>
    %cst = arith.constant dense<0.000000e+00> : vector<64x32xf32>
    %7 = tpu.matmul %6, %1, %cst {dimension_numbers = #tpu.dot_dimension_numbers<[1], [0], [0], [1], [0, 0, 1, 1], [], []>} : vector<64x16xf32>, vector<16x32xf32>, vector<64x32xf32> -> vector<64x32xf32>
    %8 = vector.broadcast %3 : vector<1x32xf32> to vector<64x32xf32>
    %9 = arith.addf %7, %8 : vector<64x32xf32>
    %cst_3 = arith.constant 0.000000e+00 : f32
    %10 = vector.broadcast %cst_3 : f32 to vector<8x32xf32>
    %11 = vector.extract_strided_slice %9 {offsets = [0, 0], sizes = [8, 32], strides = [1, 1]} : vector<64x32xf32> to vector<8x32xf32>
    %cst_4 = arith.constant dense<0.000000e+00> : vector<8x32xf32>
    %12 = tpu.matmul %10, %2, %cst_4 {dimension_numbers = #tpu.dot_dimension_numbers<[1], [0], [0], [1], [0, 0, 1, 1], [], []>} : vector<8x32xf32>, vector<32x32xf32>, vector<8x32xf32> -> vector<8x32xf32>
    %13 = arith.addf %11, %12 : vector<8x32xf32>
    %14 = math.tanh %13 : vector<8x32xf32>
    %15 = vector.extract_strided_slice %9 {offsets = [8, 0], sizes = [8, 32], strides = [1, 1]} : vector<64x32xf32> to vector<8x32xf32>
    %cst_5 = arith.constant dense<0.000000e+00> : vector<8x32xf32>
    %16 = tpu.matmul %14, %2, %cst_5 {dimension_numbers = #tpu.dot_dimension_numbers<[1], [0], [0], [1], [0, 0, 1, 1], [], []>} : vector<8x32xf32>, vector<32x32xf32>, vector<8x32xf32> -> vector<8x32xf32>
    %17 = arith.addf %15, %16 : vector<8x32xf32>
    %18 = math.tanh %17 : vector<8x32xf32>
    %19 = vector.extract_strided_slice %9 {offsets = [16, 0], sizes = [8, 32], strides = [1, 1]} : vector<64x32xf32> to vector<8x32xf32>
    %cst_6 = arith.constant dense<0.000000e+00> : vector<8x32xf32>
    %20 = tpu.matmul %18, %2, %cst_6 {dimension_numbers = #tpu.dot_dimension_numbers<[1], [0], [0], [1], [0, 0, 1, 1], [], []>} : vector<8x32xf32>, vector<32x32xf32>, vector<8x32xf32> -> vector<8x32xf32>
    %21 = arith.addf %19, %20 : vector<8x32xf32>
    %22 = math.tanh %21 : vector<8x32xf32>
    %23 = vector.extract_strided_slice %9 {offsets = [24, 0], sizes = [8, 32], strides = [1, 1]} : vector<64x32xf32> to vector<8x32xf32>
    %cst_7 = arith.constant dense<0.000000e+00> : vector<8x32xf32>
    %24 = tpu.matmul %22, %2, %cst_7 {dimension_numbers = #tpu.dot_dimension_numbers<[1], [0], [0], [1], [0, 0, 1, 1], [], []>} : vector<8x32xf32>, vector<32x32xf32>, vector<8x32xf32> -> vector<8x32xf32>
    %25 = arith.addf %23, %24 : vector<8x32xf32>
    %26 = math.tanh %25 : vector<8x32xf32>
    %27 = vector.extract_strided_slice %9 {offsets = [32, 0], sizes = [8, 32], strides = [1, 1]} : vector<64x32xf32> to vector<8x32xf32>
    %cst_8 = arith.constant dense<0.000000e+00> : vector<8x32xf32>
    %28 = tpu.matmul %26, %2, %cst_8 {dimension_numbers = #tpu.dot_dimension_numbers<[1], [0], [0], [1], [0, 0, 1, 1], [], []>} : vector<8x32xf32>, vector<32x32xf32>, vector<8x32xf32> -> vector<8x32xf32>
    %29 = arith.addf %27, %28 : vector<8x32xf32>
    %30 = math.tanh %29 : vector<8x32xf32>
    %31 = vector.extract_strided_slice %9 {offsets = [40, 0], sizes = [8, 32], strides = [1, 1]} : vector<64x32xf32> to vector<8x32xf32>
    %cst_9 = arith.constant dense<0.000000e+00> : vector<8x32xf32>
    %32 = tpu.matmul %30, %2, %cst_9 {dimension_numbers = #tpu.dot_dimension_numbers<[1], [0], [0], [1], [0, 0, 1, 1], [], []>} : vector<8x32xf32>, vector<32x32xf32>, vector<8x32xf32> -> vector<8x32xf32>
    %33 = arith.addf %31, %32 : vector<8x32xf32>
    %34 = math.tanh %33 : vector<8x32xf32>
    %35 = vector.extract_strided_slice %9 {offsets = [48, 0], sizes = [8, 32], strides = [1, 1]} : vector<64x32xf32> to vector<8x32xf32>
    %cst_10 = arith.constant dense<0.000000e+00> : vector<8x32xf32>
    %36 = tpu.matmul %34, %2, %cst_10 {dimension_numbers = #tpu.dot_dimension_numbers<[1], [0], [0], [1], [0, 0, 1, 1], [], []>} : vector<8x32xf32>, vector<32x32xf32>, vector<8x32xf32> -> vector<8x32xf32>
    %37 = arith.addf %35, %36 : vector<8x32xf32>
    %38 = math.tanh %37 : vector<8x32xf32>
    %39 = vector.extract_strided_slice %9 {offsets = [56, 0], sizes = [8, 32], strides = [1, 1]} : vector<64x32xf32> to vector<8x32xf32>
    %cst_11 = arith.constant dense<0.000000e+00> : vector<8x32xf32>
    %40 = tpu.matmul %38, %2, %cst_11 {dimension_numbers = #tpu.dot_dimension_numbers<[1], [0], [0], [1], [0, 0, 1, 1], [], []>} : vector<8x32xf32>, vector<32x32xf32>, vector<8x32xf32> -> vector<8x32xf32>
    %41 = arith.addf %39, %40 : vector<8x32xf32>
    %42 = math.tanh %41 : vector<8x32xf32>
    %cst_12 = arith.constant dense<0.000000e+00> : vector<8x128xf32>
    %43 = tpu.matmul %42, %4, %cst_12 {dimension_numbers = #tpu.dot_dimension_numbers<[1], [0], [0], [1], [0, 0, 1, 1], [], []>} : vector<8x32xf32>, vector<32x128xf32>, vector<8x128xf32> -> vector<8x128xf32>
    %44 = vector.broadcast %5 : vector<1x128xf32> to vector<8x128xf32>
    %45 = arith.addf %43, %44 : vector<8x128xf32>
    %cst_13 = arith.constant dense<0xFF800000> : vector<8xf32>
    %46 = vector.multi_reduction <maximumf>, %45, %cst_13 [1] : vector<8x128xf32> to vector<8xf32>
    %47 = vector.shape_cast %46 : vector<8xf32> to vector<8x1xf32>
    %48 = vector.broadcast %47 : vector<8x1xf32> to vector<8x128xf32>
    %49 = arith.subf %45, %48 : vector<8x128xf32>
    %50 = math.exp %49 : vector<8x128xf32>
    %cst_14 = arith.constant dense<0.000000e+00> : vector<8xf32>
    %51 = vector.multi_reduction <add>, %50, %cst_14 [1] : vector<8x128xf32> to vector<8xf32>
    %52 = vector.shape_cast %51 : vector<8xf32> to vector<8x1xf32>
    %53 = math.log %52 : vector<8x1xf32>
    %54 = vector.broadcast %53 : vector<8x1xf32> to vector<8x128xf32>
    %55 = arith.subf %49, %54 : vector<8x128xf32>
    %c0_15 = arith.constant 0 : index
    %c0_16 = arith.constant 0 : index
    %56 = vector.load %arg2[%c0_15, %c0_16] : memref<8x128xf32, #tpu.memory_space<vmem>>, vector<8x128xf32>
    tpu.vector_store %arg2[%c0_15, %c0_16], %55 {strides = array<i32>} : memref<8x128xf32, #tpu.memory_space<vmem>>, vector<8x128xf32>,
    return
  }
}

</mosaic_0001>

<llo_original>
// kernel: _lambda_.1
$region0: #{_lambda_.1}
  #allocation0 [shape = 'u32[]', space=smem, size = 0x4, offset = 0x4, fixed_abs, tag = 'smem constant byte address 0x4 - core index']
  #allocation1 [shape = 'u32[144,128]{1,0:T(1,128)}', space=vmem, size = 0x12000, scoped, tag = 'internal scratch']
  %s0 = inlined_call_operand.vmem [shape: f32[64,16], index: 0, kind: input, shape index: {}]
  %s1 = inlined_call_operand.vmem [shape: f32[96,128], index: 1, kind: input, shape index: {}]
  %s2 = inlined_call_operand.vmem [shape: f32[8,128], index: 2, kind: output, shape index: {}]
  %s3 = sld [smem:[#allocation0]]
  $region18: #{_lambda_.1} parent=0
    _
  %s5 = ssub.s32 1, %s3
  %s6 = scalar_select 0, %s5, %s3
  // Predicated region
  $region2: #{_lambda_.1} parent=0 // pred_check
    _
  $region3: #{_lambda_.1} parent=0 // pred_check_branch
    %8 = sbr.rel (0) target = $region5
  $region4: #{_lambda_.1} parent=0 // pred_region
    _
  $region5: #{_lambda_.1} parent=0 // pred_fallthru
    _
  // Predicated region
  $region6: #{_lambda_.1} parent=0 // pred_check
    _
  $region7: #{_lambda_.1} parent=0 // pred_check_branch
    %10 = sbr.rel (0) target = $region9
  $region8: #{_lambda_.1} parent=0 // pred_region
    _
  $region9: #{_lambda_.1} parent=0 // pred_fallthru
    _
  %v11 = vld [vmem:[%s1] sm:$0xff]
  %v12 = vld [vmem:[%s1 + $0x8] sm:$0xff]
  %v13 = vld [vmem:[%s1 + $0x10] sm:$0xff]
  %v14 = vld [vmem:[%s1 + $0x18] sm:$0xff]
  %v15 = vld [vmem:[%s1 + $0x20] sm:$0xff]
  %v16 = vld [vmem:[%s1 + $0x28] sm:$0xff]
  %v17 = vld [vmem:[%s1 + $0x30] sm:$0xff]
  %v18 = vld [vmem:[%s1 + $0x38] sm:$0xff]
  %v19 = vld [vmem:[%s1 + $0x40] sm:$0xff]
  %v20 = vld [vmem:[%s1 + $0x48] sm:$0xff]
  %v21 = vld [vmem:[%s1 + $0x50] sm:$0xff]
  %v22 = vld [vmem:[%s1 + $0x58] sm:$0xff]
  %v23 = vld [vmem:[%s0] sm:$0xff]
  %v24 = vld [vmem:[%s0 + $0x8] sm:$0xff]
  %v25 = vld [vmem:[%s0 + $0x10] sm:$0xff]
  %v26 = vld [vmem:[%s0 + $0x18] sm:$0xff]
  %v27 = vld [vmem:[%s0 + $0x20] sm:$0xff]
  %v28 = vld [vmem:[%s0 + $0x28] sm:$0xff]
  %v29 = vld [vmem:[%s0 + $0x30] sm:$0xff]
  %v30 = vld [vmem:[%s0 + $0x38] sm:$0xff]
  %v31 = vlaneseq
  %v32 = vshrl.u32 %v31, 7
  %v33 = vsub.s32 0, %v32
  %v34 = vrot.slane %v17, %v33
  %vm35 = vcmask 130048
  %v37 = vsel %vm35, %v23, 0
  %v40 = vsel %vm35, %v24, 0
  %v43 = vsel %vm35, %v25, 0
  %v46 = vsel %vm35, %v26, 0
  %v49 = vsel %vm35, %v27, 0
  %v52 = vsel %vm35, %v28, 0
  %v55 = vsel %vm35, %v29, 0
  %v58 = vsel %vm35, %v30, 0
  %60 = vmatprep.subr.mxu0 0.0
  %61 = vmatpush1.msra.mxu0 %v11
  %62 = vmatprep.subr.mxu0 0.0
  %63 = vmatpush1.msra.mxu0 %v12
  %64 = vmatprep.subr.mxu0 0.0
  %65 = vmatpush1.msra.mxu0 0.0
  %66 = vmatprep.subr.mxu0 0.0
  %67 = vmatpush1.msra.mxu0 0.0
  %68 = vmatprep.subr.mxu0 0.0
  %69 = vmatpush1.msra.mxu0 0.0
  %70 = vmatprep.subr.mxu0 0.0
  %71 = vmatpush1.msra.mxu0 0.0
  %72 = vmatprep.subr.mxu0 0.0
  %73 = vmatpush1.msra.mxu0 0.0
  %74 = vmatprep.subr.mxu0 0.0
  %75 = vmatpush1.msra.mxu0 0.0
  %76 = vmatprep.subr.mxu0 0.0
  %77 = vmatpush1.msra.mxu0 0.0
  %78 = vmatprep.subr.mxu0 0.0
  %79 = vmatpush1.msra.mxu0 0.0
  %80 = vmatprep.subr.mxu0 0.0
  %81 = vmatpush1.msra.mxu0 0.0
  %82 = vmatprep.subr.mxu0 0.0
  %83 = vmatpush1.msra.mxu0 0.0
  %84 = vmatprep.subr.mxu0 0.0
  %85 = vmatpush1.msra.mxu0 0.0
  %86 = vmatprep.subr.mxu0 0.0
  %87 = vmatpush1.msra.mxu0 0.0
  %88 = vmatprep.subr.mxu0 0.0
  %89 = vmatpush1.msra.mxu0 0.0
  %90 = vmatprep.subr.mxu0 0.0
  %91 = vmatpush1.msra.mxu0 0.0
  %92 = vmatprep.subr.mxu0 0.0
  %93 = vmatpush1.msra.mxu0 0.0
  %94 = vmatprep.subr.mxu0 0.0
  %95 = vmatpush1.msra.mxu0 0.0
  %96 = vmatprep.subr.mxu0 0.0
  %97 = vmatpush1.msra.mxu0 0.0
  %98 = vmatprep.subr.mxu0 0.0
  %99 = vmatpush1.msra.mxu0 0.0
  %100 = vmatprep.subr.mxu0 0.0
  %101 = vmatpush1.msra.mxu0 0.0
  %102 = vmatprep.subr.mxu0 0.0
  %103 = vmatpush1.msra.mxu0 0.0
  %104 = vmatprep.subr.mxu0 0.0
  %105 = vmatpush1.msra.mxu0 0.0
  %106 = vmatprep.subr.mxu0 0.0
  %107 = vmatpush1.msra.mxu0 0.0
  %108 = vmatprep.subr.mxu0 0.0
  %109 = vmatpush1.msra.mxu0 0.0
  %110 = vmatprep.subr.mxu0 0.0
  %111 = vmatpush1.msra.mxu0 0.0
  %112 = vmatprep.subr.mxu0 0.0
  %113 = vmatpush1.msra.mxu0 0.0
  %114 = vmatprep.subr.mxu0 0.0
  %115 = vmatpush1.msra.mxu0 0.0
  %116 = vmatprep.subr.mxu0 0.0
  %117 = vmatpush1.msra.mxu0 0.0
  %118 = vmatprep.subr.mxu0 0.0
  %119 = vmatpush1.msra.mxu0 0.0
  %120 = vmatprep.subr.mxu0 0.0
  %121 = vmatpush1.msra.mxu0 0.0
  %122 = vmatprep.subr.mxu0 0.0
  %123 = vmatpush1.msra.mxu0 0.0
  %124 = vmatprep.mubr.f32.mxu0 0.0
  %125 = vmatmul.mubr.f32.gmra.mrb[0].mxu0 %v37
  %v126 = vpop.f32.mrb[0].mxu0
  %v127 = vadd.f32 %v34, %v126
  %v128 = vpop.f32.mrb[0].mxu0
  %129 = vmatprep.mubr.f32.mxu0 0.0
  %130 = vmatmul.mubr.f32.gmra.mrb[0].mxu0 %v40
  %v131 = vpop.f32.mrb[0].mxu0
  %v132 = vadd.f32 %v34, %v131
  %v133 = vpop.f32.mrb[0].mxu0
  %134 = vmatprep.mubr.f32.mxu0 0.0
  %135 = vmatmul.mubr.f32.gmra.mrb[0].mxu0 %v43
  %v136 = vpop.f32.mrb[0].mxu0
  %v137 = vadd.f32 %v34, %v136
  %v138 = vpop.f32.mrb[0].mxu0
  %139 = vmatprep.mubr.f32.mxu0 0.0
  %140 = vmatmul.mubr.f32.gmra.mrb[0].mxu0 %v46
  %v141 = vpop.f32.mrb[0].mxu0
  %v142 = vadd.f32 %v34, %v141
  %v143 = vpop.f32.mrb[0].mxu0
  %144 = vmatprep.mubr.f32.mxu0 0.0
  %145 = vmatmul.mubr.f32.gmra.mrb[0].mxu0 %v49
  %v146 = vpop.f32.mrb[0].mxu0
  %v147 = vadd.f32 %v34, %v146
  %v148 = vpop.f32.mrb[0].mxu0
  %149 = vmatprep.mubr.f32.mxu0 0.0
  %150 = vmatmul.mubr.f32.gmra.mrb[0].mxu0 %v52
  %v151 = vpop.f32.mrb[0].mxu0
  %v152 = vadd.f32 %v34, %v151
  %v153 = vpop.f32.mrb[0].mxu0
  %154 = vmatprep.mubr.f32.mxu0 0.0
  %155 = vmatmul.mubr.f32.gmra.mrb[0].mxu0 %v55
  %v156 = vpop.f32.mrb[0].mxu0
  %v157 = vadd.f32 %v34, %v156
  %v158 = vpop.f32.mrb[0].mxu0
  %159 = vmatprep.mubr.f32.mxu0 0.0
  %160 = vmatmul.mubr.f32.gmra.mrb[0].mxu0 %v58
  %v161 = vpop.f32.mrb[0].mxu0
  %v162 = vadd.f32 %v34, %v161
  %v163 = vpop.f32.mrb[0].mxu0
  %164 = vdwg.mxu0
  %vm165 = vcmask 261120
  %v167 = vsel %vm165, 0.0, 0
  %169 = vmatprep.subr.mxu0 0.0
  %170 = vmatpush1.msra.mxu0 %v13
  %171 = vmatprep.subr.mxu0 0.0
  %172 = vmatpush1.msra.mxu0 %v14
  %173 = vmatprep.subr.mxu0 0.0
  %174 = vmatpush1.msra.mxu0 %v15
  %175 = vmatprep.subr.mxu0 0.0
  %176 = vmatpush1.msra.mxu0 %v16
  %177 = vmatprep.subr.mxu0 0.0
  %178 = vmatpush1.msra.mxu0 0.0
  %179 = vmatprep.subr.mxu0 0.0
  %180 = vmatpush1.msra.mxu0 0.0
  %181 = vmatprep.subr.mxu0 0.0
  %182 = vmatpush1.msra.mxu0 0.0
  %183 = vmatprep.subr.mxu0 0.0
  %184 = vmatpush1.msra.mxu0 0.0
  %185 = vmatprep.subr.mxu0 0.0
  %186 = vmatpush1.msra.mxu0 0.0
  %187 = vmatprep.subr.mxu0 0.0
  %188 = vmatpush1.msra.mxu0 0.0
  %189 = vmatprep.subr.mxu0 0.0
  %190 = vmatpush1.msra.mxu0 0.0
  %191 = vmatprep.subr.mxu0 0.0
  %192 = vmatpush1.msra.mxu0 0.0
  %193 = vmatprep.subr.mxu0 0.0
  %194 = vmatpush1.msra.mxu0 0.0
  %195 = vmatprep.subr.mxu0 0.0
  %196 = vmatpush1.msra.mxu0 0.0
  %197 = vmatprep.subr.mxu0 0.0
  %198 = vmatpush1.msra.mxu0 0.0
  %199 = vmatprep.subr.mxu0 0.0
  %200 = vmatpush1.msra.mxu0 0.0
  %201 = vmatprep.subr.mxu0 0.0
  %202 = vmatpush1.msra.mxu0 0.0
  %203 = vmatprep.subr.mxu0 0.0
  %204 = vmatpush1.msra.mxu0 0.0
  %205 = vmatprep.subr.mxu0 0.0
  %206 = vmatpush1.msra.mxu0 0.0
  %207 = vmatprep.subr.mxu0 0.0
  %208 = vmatpush1.msra.mxu0 0.0
  %209 = vmatprep.subr.mxu0 0.0
  %210 = vmatpush1.msra.mxu0 0.0
  %211 = vmatprep.subr.mxu0 0.0
  %212 = vmatpush1.msra.mxu0 0.0
  %213 = vmatprep.subr.mxu0 0.0
  %214 = vmatpush1.msra.mxu0 0.0
  %215 = vmatprep.subr.mxu0 0.0
  %216 = vmatpush1.msra.mxu0 0.0
  %217 = vmatprep.subr.mxu0 0.0
  %218 = vmatpush1.msra.mxu0 0.0
  %219 = vmatprep.subr.mxu0 0.0
  %220 = vmatpush1.msra.mxu0 0.0
  %221 = vmatprep.subr.mxu0 0.0
  %222 = vmatpush1.msra.mxu0 0.0
  %223 = vmatprep.subr.mxu0 0.0
  %224 = vmatpush1.msra.mxu0 0.0
  %225 = vmatprep.subr.mxu0 0.0
  %226 = vmatpush1.msra.mxu0 0.0
  %227 = vmatprep.subr.mxu0 0.0
  %228 = vmatpush1.msra.mxu0 0.0
  %229 = vmatprep.subr.mxu0 0.0
  %230 = vmatpush1.msra.mxu0 0.0
  %231 = vmatprep.subr.mxu0 0.0
  %232 = vmatpush1.msra.mxu0 0.0
  %233 = vmatprep.mubr.f32.mxu0 0.0
  %234 = vmatmul.mubr.f32.gmra.mrb[0].mxu0 %v167
  %v235 = vpop.f32.mrb[0].mxu0
  %v236 = vadd.f32 0.0, %v235
  %v237 = vpop.f32.mrb[0].mxu0
  %238 = vdwg.mxu0
  %v239 = vadd.f32 %v127, %v236
  %v240 = vtanh.pop %v239
  %v242 = vsel %vm165, %v240, 0
  %244 = vmatprep.subr.mxu0 0.0
  %245 = vmatpush1.msra.mxu0 %v13
  %246 = vmatprep.subr.mxu0 0.0
  %247 = vmatpush1.msra.mxu0 %v14
  %248 = vmatprep.subr.mxu0 0.0
  %249 = vmatpush1.msra.mxu0 %v15
  %250 = vmatprep.subr.mxu0 0.0
  %251 = vmatpush1.msra.mxu0 %v16
  %252 = vmatprep.subr.mxu0 0.0
  %253 = vmatpush1.msra.mxu0 0.0
  %254 = vmatprep.subr.mxu0 0.0
  %255 = vmatpush1.msra.mxu0 0.0
  %256 = vmatprep.subr.mxu0 0.0
  %257 = vmatpush1.msra.mxu0 0.0
  %258 = vmatprep.subr.mxu0 0.0
  %259 = vmatpush1.msra.mxu0 0.0
  %260 = vmatprep.subr.mxu0 0.0
  %261 = vmatpush1.msra.mxu0 0.0
  %262 = vmatprep.subr.mxu0 0.0
  %263 = vmatpush1.msra.mxu0 0.0
  %264 = vmatprep.subr.mxu0 0.0
  %265 = vmatpush1.msra.mxu0 0.0
  %266 = vmatprep.subr.mxu0 0.0
  %267 = vmatpush1.msra.mxu0 0.0
  %268 = vmatprep.subr.mxu0 0.0
  %269 = vmatpush1.msra.mxu0 0.0
  %270 = vmatprep.subr.mxu0 0.0
  %271 = vmatpush1.msra.mxu0 0.0
  %272 = vmatprep.subr.mxu0 0.0
  %273 = vmatpush1.msra.mxu0 0.0
  %274 = vmatprep.subr.mxu0 0.0
  %275 = vmatpush1.msra.mxu0 0.0
  %276 = vmatprep.subr.mxu0 0.0
  %277 = vmatpush1.msra.mxu0 0.0
  %278 = vmatprep.subr.mxu0 0.0
  %279 = vmatpush1.msra.mxu0 0.0
  %280 = vmatprep.subr.mxu0 0.0
  %281 = vmatpush1.msra.mxu0 0.0
  %282 = vmatprep.subr.mxu0 0.0
  %283 = vmatpush1.msra.mxu0 0.0
  %284 = vmatprep.subr.mxu0 0.0
  %285 = vmatpush1.msra.mxu0 0.0
  %286 = vmatprep.subr.mxu0 0.0
  %287 = vmatpush1.msra.mxu0 0.0
  %288 = vmatprep.subr.mxu0 0.0
  %289 = vmatpush1.msra.mxu0 0.0
  %290 = vmatprep.subr.mxu0 0.0
  %291 = vmatpush1.msra.mxu0 0.0
  %292 = vmatprep.subr.mxu0 0.0
  %293 = vmatpush1.msra.mxu0 0.0
  %294 = vmatprep.subr.mxu0 0.0
  %295 = vmatpush1.msra.mxu0 0.0
  %296 = vmatprep.subr.mxu0 0.0
  %297 = vmatpush1.msra.mxu0 0.0
  %298 = vmatprep.subr.mxu0 0.0
  %299 = vmatpush1.msra.mxu0 0.0
  %300 = vmatprep.subr.mxu0 0.0
  %301 = vmatpush1.msra.mxu0 0.0
  %302 = vmatprep.subr.mxu0 0.0
  %303 = vmatpush1.msra.mxu0 0.0
  %304 = vmatprep.subr.mxu0 0.0
  %305 = vmatpush1.msra.mxu0 0.0
  %306 = vmatprep.subr.mxu0 0.0
  %307 = vmatpush1.msra.mxu0 0.0
  %308 = vmatprep.mubr.f32.mxu0 0.0
  %309 = vmatmul.mubr.f32.gmra.mrb[0].mxu0 %v242
  %v310 = vpop.f32.mrb[0].mxu0
  %v311 = vadd.f32 0.0, %v310
  %v312 = vpop.f32.mrb[0].mxu0
  %313 = vdwg.mxu0
  %v314 = vadd.f32 %v132, %v311
  %v315 = vtanh.pop %v314
  %v317 = vsel %vm165, %v315, 0
  %319 = vmatprep.subr.mxu0 0.0
  %320 = vmatpush1.msra.mxu0 %v13
  %321 = vmatprep.subr.mxu0 0.0
  %322 = vmatpush1.msra.mxu0 %v14
  %323 = vmatprep.subr.mxu0 0.0
  %324 = vmatpush1.msra.mxu0 %v15
  %325 = vmatprep.subr.mxu0 0.0
  %326 = vmatpush1.msra.mxu0 %v16
  %327 = vmatprep.subr.mxu0 0.0
  %328 = vmatpush1.msra.mxu0 0.0
  %329 = vmatprep.subr.mxu0 0.0
  %330 = vmatpush1.msra.mxu0 0.0
  %331 = vmatprep.subr.mxu0 0.0
  %332 = vmatpush1.msra.mxu0 0.0
  %333 = vmatprep.subr.mxu0 0.0
  %334 = vmatpush1.msra.mxu0 0.0
  %335 = vmatprep.subr.mxu0 0.0
  %336 = vmatpush1.msra.mxu0 0.0
  %337 = vmatprep.subr.mxu0 0.0
  %338 = vmatpush1.msra.mxu0 0.0
  %339 = vmatprep.subr.mxu0 0.0
  %340 = vmatpush1.msra.mxu0 0.0
  %341 = vmatprep.subr.mxu0 0.0
  %342 = vmatpush1.msra.mxu0 0.0
  %343 = vmatprep.subr.mxu0 0.0
  %344 = vmatpush1.msra.mxu0 0.0
  %345 = vmatprep.subr.mxu0 0.0
  %346 = vmatpush1.msra.mxu0 0.0
  %347 = vmatprep.subr.mxu0 0.0
  %348 = vmatpush1.msra.mxu0 0.0
  %349 = vmatprep.subr.mxu0 0.0
  %350 = vmatpush1.msra.mxu0 0.0
  %351 = vmatprep.subr.mxu0 0.0
  %352 = vmatpush1.msra.mxu0 0.0
  %353 = vmatprep.subr.mxu0 0.0
  %354 = vmatpush1.msra.mxu0 0.0
  %355 = vmatprep.subr.mxu0 0.0
  %356 = vmatpush1.msra.mxu0 0.0
  %357 = vmatprep.subr.mxu0 0.0
  %358 = vmatpush1.msra.mxu0 0.0
  %359 = vmatprep.subr.mxu0 0.0
  %360 = vmatpush1.msra.mxu0 0.0
  %361 = vmatprep.subr.mxu0 0.0
  %362 = vmatpush1.msra.mxu0 0.0
  %363 = vmatprep.subr.mxu0 0.0
  %364 = vmatpush1.msra.mxu0 0.0
  %365 = vmatprep.subr.mxu0 0.0
  %366 = vmatpush1.msra.mxu0 0.0
  %367 = vmatprep.subr.mxu0 0.0
  %368 = vmatpush1.msra.mxu0 0.0
  %369 = vmatprep.subr.mxu0 0.0
  %370 = vmatpush1.msra.mxu0 0.0
  %371 = vmatprep.subr.mxu0 0.0
  %372 = vmatpush1.msra.mxu0 0.0
  %373 = vmatprep.subr.mxu0 0.0
  %374 = vmatpush1.msra.mxu0 0.0
  %375 = vmatprep.subr.mxu0 0.0
  %376 = vmatpush1.msra.mxu0 0.0
  %377 = vmatprep.subr.mxu0 0.0
  %378 = vmatpush1.msra.mxu0 0.0
  %379 = vmatprep.subr.mxu0 0.0
  %380 = vmatpush1.msra.mxu0 0.0
  %381 = vmatprep.subr.mxu0 0.0
  %382 = vmatpush1.msra.mxu0 0.0
  %383 = vmatprep.mubr.f32.mxu0 0.0
  %384 = vmatmul.mubr.f32.gmra.mrb[0].mxu0 %v317
  %v385 = vpop.f32.mrb[0].mxu0
  %v386 = vadd.f32 0.0, %v385
  %v387 = vpop.f32.mrb[0].mxu0
  %388 = vdwg.mxu0
  %v389 = vadd.f32 %v137, %v386
  %v390 = vtanh.pop %v389
  %v392 = vsel %vm165, %v390, 0
  %394 = vmatprep.subr.mxu0 0.0
  %395 = vmatpush1.msra.mxu0 %v13
  %396 = vmatprep.subr.mxu0 0.0
  %397 = vmatpush1.msra.mxu0 %v14
  %398 = vmatprep.subr.mxu0 0.0
  %399 = vmatpush1.msra.mxu0 %v15
  %400 = vmatprep.subr.mxu0 0.0
  %401 = vmatpush1.msra.mxu0 %v16
  %402 = vmatprep.subr.mxu0 0.0
  %403 = vmatpush1.msra.mxu0 0.0
  %404 = vmatprep.subr.mxu0 0.0
  %405 = vmatpush1.msra.mxu0 0.0
  %406 = vmatprep.subr.mxu0 0.0
  %407 = vmatpush1.msra.mxu0 0.0
  %408 = vmatprep.subr.mxu0 0.0
  %409 = vmatpush1.msra.mxu0 0.0
  %410 = vmatprep.subr.mxu0 0.0
  %411 = vmatpush1.msra.mxu0 0.0
  %412 = vmatprep.subr.mxu0 0.0
  %413 = vmatpush1.msra.mxu0 0.0
  %414 = vmatprep.subr.mxu0 0.0
  %415 = vmatpush1.msra.mxu0 0.0
  %416 = vmatprep.subr.mxu0 0.0
  %417 = vmatpush1.msra.mxu0 0.0
  %418 = vmatprep.subr.mxu0 0.0
  %419 = vmatpush1.msra.mxu0 0.0
  %420 = vmatprep.subr.mxu0 0.0
  %421 = vmatpush1.msra.mxu0 0.0
  %422 = vmatprep.subr.mxu0 0.0
  %423 = vmatpush1.msra.mxu0 0.0
  %424 = vmatprep.subr.mxu0 0.0
  %425 = vmatpush1.msra.mxu0 0.0
  %426 = vmatprep.subr.mxu0 0.0
  %427 = vmatpush1.msra.mxu0 0.0
  %428 = vmatprep.subr.mxu0 0.0
  %429 = vmatpush1.msra.mxu0 0.0
  %430 = vmatprep.subr.mxu0 0.0
  %431 = vmatpush1.msra.mxu0 0.0
  %432 = vmatprep.subr.mxu0 0.0
  %433 = vmatpush1.msra.mxu0 0.0
  %434 = vmatprep.subr.mxu0 0.0
  %435 = vmatpush1.msra.mxu0 0.0
  %436 = vmatprep.subr.mxu0 0.0
  %437 = vmatpush1.msra.mxu0 0.0
  %438 = vmatprep.subr.mxu0 0.0
  %439 = vmatpush1.msra.mxu0 0.0
  %440 = vmatprep.subr.mxu0 0.0
  %441 = vmatpush1.msra.mxu0 0.0
  %442 = vmatprep.subr.mxu0 0.0
  %443 = vmatpush1.msra.mxu0 0.0
  %444 = vmatprep.subr.mxu0 0.0
  %445 = vmatpush1.msra.mxu0 0.0
  %446 = vmatprep.subr.mxu0 0.0
  %447 = vmatpush1.msra.mxu0 0.0
  %448 = vmatprep.subr.mxu0 0.0
  %449 = vmatpush1.msra.mxu0 0.0
  %450 = vmatprep.subr.mxu0 0.0
  %451 = vmatpush1.msra.mxu0 0.0
  %452 = vmatprep.subr.mxu0 0.0
  %453 = vmatpush1.msra.mxu0 0.0
  %454 = vmatprep.subr.mxu0 0.0
  %455 = vmatpush1.msra.mxu0 0.0
  %456 = vmatprep.subr.mxu0 0.0
  %457 = vmatpush1.msra.mxu0 0.0
  %458 = vmatprep.mubr.f32.mxu0 0.0
  %459 = vmatmul.mubr.f32.gmra.mrb[0].mxu0 %v392
  %v460 = vpop.f32.mrb[0].mxu0
  %v461 = vadd.f32 0.0, %v460
  %v462 = vpop.f32.mrb[0].mxu0
  %463 = vdwg.mxu0
  %v464 = vadd.f32 %v142, %v461
  %v465 = vtanh.pop %v464
  %v467 = vsel %vm165, %v465, 0
  %469 = vmatprep.subr.mxu0 0.0
  %470 = vmatpush1.msra.mxu0 %v13
  %471 = vmatprep.subr.mxu0 0.0
  %472 = vmatpush1.msra.mxu0 %v14
  %473 = vmatprep.subr.mxu0 0.0
  %474 = vmatpush1.msra.mxu0 %v15
  %475 = vmatprep.subr.mxu0 0.0
  %476 = vmatpush1.msra.mxu0 %v16
  %477 = vmatprep.subr.mxu0 0.0
  %478 = vmatpush1.msra.mxu0 0.0
  %479 = vmatprep.subr.mxu0 0.0
  %480 = vmatpush1.msra.mxu0 0.0
  %481 = vmatprep.subr.mxu0 0.0
  %482 = vmatpush1.msra.mxu0 0.0
  %483 = vmatprep.subr.mxu0 0.0
  %484 = vmatpush1.msra.mxu0 0.0
  %485 = vmatprep.subr.mxu0 0.0
  %486 = vmatpush1.msra.mxu0 0.0
  %487 = vmatprep.subr.mxu0 0.0
  %488 = vmatpush1.msra.mxu0 0.0
  %489 = vmatprep.subr.mxu0 0.0
  %490 = vmatpush1.msra.mxu0 0.0
  %491 = vmatprep.subr.mxu0 0.0
  %492 = vmatpush1.msra.mxu0 0.0
  %493 = vmatprep.subr.mxu0 0.0
  %494 = vmatpush1.msra.mxu0 0.0
  %495 = vmatprep.subr.mxu0 0.0
  %496 = vmatpush1.msra.mxu0 0.0
  %497 = vmatprep.subr.mxu0 0.0
  %498 = vmatpush1.msra.mxu0 0.0
  %499 = vmatprep.subr.mxu0 0.0
  %500 = vmatpush1.msra.mxu0 0.0
  %501 = vmatprep.subr.mxu0 0.0
  %502 = vmatpush1.msra.mxu0 0.0
  %503 = vmatprep.subr.mxu0 0.0
  %504 = vmatpush1.msra.mxu0 0.0
  %505 = vmatprep.subr.mxu0 0.0
  %506 = vmatpush1.msra.mxu0 0.0
  %507 = vmatprep.subr.mxu0 0.0
  %508 = vmatpush1.msra.mxu0 0.0
  %509 = vmatprep.subr.mxu0 0.0
  %510 = vmatpush1.msra.mxu0 0.0
  %511 = vmatprep.subr.mxu0 0.0
  %512 = vmatpush1.msra.mxu0 0.0
  %513 = vmatprep.subr.mxu0 0.0
  %514 = vmatpush1.msra.mxu0 0.0
  %515 = vmatprep.subr.mxu0 0.0
  %516 = vmatpush1.msra.mxu0 0.0
  %517 = vmatprep.subr.mxu0 0.0
  %518 = vmatpush1.msra.mxu0 0.0
  %519 = vmatprep.subr.mxu0 0.0
  %520 = vmatpush1.msra.mxu0 0.0
  %521 = vmatprep.subr.mxu0 0.0
  %522 = vmatpush1.msra.mxu0 0.0
  %523 = vmatprep.subr.mxu0 0.0
  %524 = vmatpush1.msra.mxu0 0.0
  %525 = vmatprep.subr.mxu0 0.0
  %526 = vmatpush1.msra.mxu0 0.0
  %527 = vmatprep.subr.mxu0 0.0
  %528 = vmatpush1.msra.mxu0 0.0
  %529 = vmatprep.subr.mxu0 0.0
  %530 = vmatpush1.msra.mxu0 0.0
  %531 = vmatprep.subr.mxu0 0.0
  %532 = vmatpush1.msra.mxu0 0.0
  %533 = vmatprep.mubr.f32.mxu0 0.0
  %534 = vmatmul.mubr.f32.gmra.mrb[0].mxu0 %v467
  %v535 = vpop.f32.mrb[0].mxu0
  %v536 = vadd.f32 0.0, %v535
  %v537 = vpop.f32.mrb[0].mxu0
  %538 = vdwg.mxu0
  %v539 = vadd.f32 %v147, %v536
  %v540 = vtanh.pop %v539
  %v542 = vsel %vm165, %v540, 0
  %544 = vmatprep.subr.mxu0 0.0
  %545 = vmatpush1.msra.mxu0 %v13
  %546 = vmatprep.subr.mxu0 0.0
  %547 = vmatpush1.msra.mxu0 %v14
  %548 = vmatprep.subr.mxu0 0.0
  %549 = vmatpush1.msra.mxu0 %v15
  %550 = vmatprep.subr.mxu0 0.0
  %551 = vmatpush1.msra.mxu0 %v16
  %552 = vmatprep.subr.mxu0 0.0
  %553 = vmatpush1.msra.mxu0 0.0
  %554 = vmatprep.subr.mxu0 0.0
  %555 = vmatpush1.msra.mxu0 0.0
  %556 = vmatprep.subr.mxu0 0.0
  %557 = vmatpush1.msra.mxu0 0.0
  %558 = vmatprep.subr.mxu0 0.0
  %559 = vmatpush1.msra.mxu0 0.0
  %560 = vmatprep.subr.mxu0 0.0
  %561 = vmatpush1.msra.mxu0 0.0
  %562 = vmatprep.subr.mxu0 0.0
  %563 = vmatpush1.msra.mxu0 0.0
  %564 = vmatprep.subr.mxu0 0.0
  %565 = vmatpush1.msra.mxu0 0.0
  %566 = vmatprep.subr.mxu0 0.0
  %567 = vmatpush1.msra.mxu0 0.0
  %568 = vmatprep.subr.mxu0 0.0
  %569 = vmatpush1.msra.mxu0 0.0
  %570 = vmatprep.subr.mxu0 0.0
  %571 = vmatpush1.msra.mxu0 0.0
  %572 = vmatprep.subr.mxu0 0.0
  %573 = vmatpush1.msra.mxu0 0.0
  %574 = vmatprep.subr.mxu0 0.0
  %575 = vmatpush1.msra.mxu0 0.0
  %576 = vmatprep.subr.mxu0 0.0
  %577 = vmatpush1.msra.mxu0 0.0
  %578 = vmatprep.subr.mxu0 0.0
  %579 = vmatpush1.msra.mxu0 0.0
  %580 = vmatprep.subr.mxu0 0.0
  %581 = vmatpush1.msra.mxu0 0.0
  %582 = vmatprep.subr.mxu0 0.0
  %583 = vmatpush1.msra.mxu0 0.0
  %584 = vmatprep.subr.mxu0 0.0
  %585 = vmatpush1.msra.mxu0 0.0
  %586 = vmatprep.subr.mxu0 0.0
  %587 = vmatpush1.msra.mxu0 0.0
  %588 = vmatprep.subr.mxu0 0.0
  %589 = vmatpush1.msra.mxu0 0.0
  %590 = vmatprep.subr.mxu0 0.0
  %591 = vmatpush1.msra.mxu0 0.0
  %592 = vmatprep.subr.mxu0 0.0
  %593 = vmatpush1.msra.mxu0 0.0
  %594 = vmatprep.subr.mxu0 0.0
  %595 = vmatpush1.msra.mxu0 0.0
  %596 = vmatprep.subr.mxu0 0.0
  %597 = vmatpush1.msra.mxu0 0.0
  %598 = vmatprep.subr.mxu0 0.0
  %599 = vmatpush1.msra.mxu0 0.0
  %600 = vmatprep.subr.mxu0 0.0
  %601 = vmatpush1.msra.mxu0 0.0
  %602 = vmatprep.subr.mxu0 0.0
  %603 = vmatpush1.msra.mxu0 0.0
  %604 = vmatprep.subr.mxu0 0.0
  %605 = vmatpush1.msra.mxu0 0.0
  %606 = vmatprep.subr.mxu0 0.0
  %607 = vmatpush1.msra.mxu0 0.0
  %608 = vmatprep.mubr.f32.mxu0 0.0
  %609 = vmatmul.mubr.f32.gmra.mrb[0].mxu0 %v542
  %v610 = vpop.f32.mrb[0].mxu0
  %v611 = vadd.f32 0.0, %v610
  %v612 = vpop.f32.mrb[0].mxu0
  %613 = vdwg.mxu0
  %v614 = vadd.f32 %v152, %v611
  %v615 = vtanh.pop %v614
  %v617 = vsel %vm165, %v615, 0
  %619 = vmatprep.subr.mxu0 0.0
  %620 = vmatpush1.msra.mxu0 %v13
  %621 = vmatprep.subr.mxu0 0.0
  %622 = vmatpush1.msra.mxu0 %v14
  %623 = vmatprep.subr.mxu0 0.0
  %624 = vmatpush1.msra.mxu0 %v15
  %625 = vmatprep.subr.mxu0 0.0
  %626 = vmatpush1.msra.mxu0 %v16
  %627 = vmatprep.subr.mxu0 0.0
  %628 = vmatpush1.msra.mxu0 0.0
  %629 = vmatprep.subr.mxu0 0.0
  %630 = vmatpush1.msra.mxu0 0.0
  %631 = vmatprep.subr.mxu0 0.0
  %632 = vmatpush1.msra.mxu0 0.0
  %633 = vmatprep.subr.mxu0 0.0
  %634 = vmatpush1.msra.mxu0 0.0
  %635 = vmatprep.subr.mxu0 0.0
  %636 = vmatpush1.msra.mxu0 0.0
  %637 = vmatprep.subr.mxu0 0.0
  %638 = vmatpush1.msra.mxu0 0.0
  %639 = vmatprep.subr.mxu0 0.0
  %640 = vmatpush1.msra.mxu0 0.0
  %641 = vmatprep.subr.mxu0 0.0
  %642 = vmatpush1.msra.mxu0 0.0
  %643 = vmatprep.subr.mxu0 0.0
  %644 = vmatpush1.msra.mxu0 0.0
  %645 = vmatprep.subr.mxu0 0.0
  %646 = vmatpush1.msra.mxu0 0.0
  %647 = vmatprep.subr.mxu0 0.0
  %648 = vmatpush1.msra.mxu0 0.0
  %649 = vmatprep.subr.mxu0 0.0
  %650 = vmatpush1.msra.mxu0 0.0
  %651 = vmatprep.subr.mxu0 0.0
  %652 = vmatpush1.msra.mxu0 0.0
  %653 = vmatprep.subr.mxu0 0.0
  %654 = vmatpush1.msra.mxu0 0.0
  %655 = vmatprep.subr.mxu0 0.0
  %656 = vmatpush1.msra.mxu0 0.0
  %657 = vmatprep.subr.mxu0 0.0
  %658 = vmatpush1.msra.mxu0 0.0
  %659 = vmatprep.subr.mxu0 0.0
  %660 = vmatpush1.msra.mxu0 0.0
  %661 = vmatprep.subr.mxu0 0.0
  %662 = vmatpush1.msra.mxu0 0.0
  %663 = vmatprep.subr.mxu0 0.0
  %664 = vmatpush1.msra.mxu0 0.0
  %665 = vmatprep.subr.mxu0 0.0
  %666 = vmatpush1.msra.mxu0 0.0
  %667 = vmatprep.subr.mxu0 0.0
  %668 = vmatpush1.msra.mxu0 0.0
  %669 = vmatprep.subr.mxu0 0.0
  %670 = vmatpush1.msra.mxu0 0.0
  %671 = vmatprep.subr.mxu0 0.0
  %672 = vmatpush1.msra.mxu0 0.0
  %673 = vmatprep.subr.mxu0 0.0
  %674 = vmatpush1.msra.mxu0 0.0
  %675 = vmatprep.subr.mxu0 0.0
  %676 = vmatpush1.msra.mxu0 0.0
  %677 = vmatprep.subr.mxu0 0.0
  %678 = vmatpush1.msra.mxu0 0.0
  %679 = vmatprep.subr.mxu0 0.0
  %680 = vmatpush1.msra.mxu0 0.0
  %681 = vmatprep.subr.mxu0 0.0
  %682 = vmatpush1.msra.mxu0 0.0
  %683 = vmatprep.mubr.f32.mxu0 0.0
  %684 = vmatmul.mubr.f32.gmra.mrb[0].mxu0 %v617
  %v685 = vpop.f32.mrb[0].mxu0
  %v686 = vadd.f32 0.0, %v685
  %v687 = vpop.f32.mrb[0].mxu0
  %688 = vdwg.mxu0
  %v689 = vadd.f32 %v157, %v686
  %v690 = vtanh.pop %v689
  %v692 = vsel %vm165, %v690, 0
  %694 = vmatprep.subr.mxu0 0.0
  %695 = vmatpush1.msra.mxu0 %v13
  %696 = vmatprep.subr.mxu0 0.0
  %697 = vmatpush1.msra.mxu0 %v14
  %698 = vmatprep.subr.mxu0 0.0
  %699 = vmatpush1.msra.mxu0 %v15
  %700 = vmatprep.subr.mxu0 0.0
  %701 = vmatpush1.msra.mxu0 %v16
  %702 = vmatprep.subr.mxu0 0.0
  %703 = vmatpush1.msra.mxu0 0.0
  %704 = vmatprep.subr.mxu0 0.0
  %705 = vmatpush1.msra.mxu0 0.0
  %706 = vmatprep.subr.mxu0 0.0
  %707 = vmatpush1.msra.mxu0 0.0
  %708 = vmatprep.subr.mxu0 0.0
  %709 = vmatpush1.msra.mxu0 0.0
  %710 = vmatprep.subr.mxu0 0.0
  %711 = vmatpush1.msra.mxu0 0.0
  %712 = vmatprep.subr.mxu0 0.0
  %713 = vmatpush1.msra.mxu0 0.0
  %714 = vmatprep.subr.mxu0 0.0
  %715 = vmatpush1.msra.mxu0 0.0
  %716 = vmatprep.subr.mxu0 0.0
  %717 = vmatpush1.msra.mxu0 0.0
  %718 = vmatprep.subr.mxu0 0.0
  %719 = vmatpush1.msra.mxu0 0.0
  %720 = vmatprep.subr.mxu0 0.0
  %721 = vmatpush1.msra.mxu0 0.0
  %722 = vmatprep.subr.mxu0 0.0
  %723 = vmatpush1.msra.mxu0 0.0
  %724 = vmatprep.subr.mxu0 0.0
  %725 = vmatpush1.msra.mxu0 0.0
  %726 = vmatprep.subr.mxu0 0.0
  %727 = vmatpush1.msra.mxu0 0.0
  %728 = vmatprep.subr.mxu0 0.0
  %729 = vmatpush1.msra.mxu0 0.0
  %730 = vmatprep.subr.mxu0 0.0
  %731 = vmatpush1.msra.mxu0 0.0
  %732 = vmatprep.subr.mxu0 0.0
  %733 = vmatpush1.msra.mxu0 0.0
  %734 = vmatprep.subr.mxu0 0.0
  %735 = vmatpush1.msra.mxu0 0.0
  %736 = vmatprep.subr.mxu0 0.0
  %737 = vmatpush1.msra.mxu0 0.0
  %738 = vmatprep.subr.mxu0 0.0
  %739 = vmatpush1.msra.mxu0 0.0
  %740 = vmatprep.subr.mxu0 0.0
  %741 = vmatpush1.msra.mxu0 0.0
  %742 = vmatprep.subr.mxu0 0.0
  %743 = vmatpush1.msra.mxu0 0.0
  %744 = vmatprep.subr.mxu0 0.0
  %745 = vmatpush1.msra.mxu0 0.0
  %746 = vmatprep.subr.mxu0 0.0
  %747 = vmatpush1.msra.mxu0 0.0
  %748 = vmatprep.subr.mxu0 0.0
  %749 = vmatpush1.msra.mxu0 0.0
  %750 = vmatprep.subr.mxu0 0.0
  %751 = vmatpush1.msra.mxu0 0.0
  %752 = vmatprep.subr.mxu0 0.0
  %753 = vmatpush1.msra.mxu0 0.0
  %754 = vmatprep.subr.mxu0 0.0
  %755 = vmatpush1.msra.mxu0 0.0
  %756 = vmatprep.subr.mxu0 0.0
  %757 = vmatpush1.msra.mxu0 0.0
  %758 = vmatprep.mubr.f32.mxu0 0.0
  %759 = vmatmul.mubr.f32.gmra.mrb[0].mxu0 %v692
  %v760 = vpop.f32.mrb[0].mxu0
  %v761 = vadd.f32 0.0, %v760
  %v762 = vpop.f32.mrb[0].mxu0
  %763 = vdwg.mxu0
  %v764 = vadd.f32 %v162, %v761
  %v765 = vtanh.pop %v764
  %v766 = vlaneseq
  %v767 = vshrl.u32 %v766, 7
  %v768 = vsub.s32 0, %v767
  %v769 = vrot.slane %v22, %v768
  %v771 = vsel %vm165, %v765, 0
  %773 = vmatprep.subr.mxu0 0.0
  %774 = vmatpush1.msra.mxu0 %v18
  %775 = vmatprep.subr.mxu0 0.0
  %776 = vmatpush1.msra.mxu0 %v19
  %777 = vmatprep.subr.mxu0 0.0
  %778 = vmatpush1.msra.mxu0 %v20
  %779 = vmatprep.subr.mxu0 0.0
  %780 = vmatpush1.msra.mxu0 %v21
  %781 = vmatprep.subr.mxu0 0.0
  %782 = vmatpush1.msra.mxu0 0.0
  %783 = vmatprep.subr.mxu0 0.0
  %784 = vmatpush1.msra.mxu0 0.0
  %785 = vmatprep.subr.mxu0 0.0
  %786 = vmatpush1.msra.mxu0 0.0
  %787 = vmatprep.subr.mxu0 0.0
  %788 = vmatpush1.msra.mxu0 0.0
  %789 = vmatprep.subr.mxu0 0.0
  %790 = vmatpush1.msra.mxu0 0.0
  %791 = vmatprep.subr.mxu0 0.0
  %792 = vmatpush1.msra.mxu0 0.0
  %793 = vmatprep.subr.mxu0 0.0
  %794 = vmatpush1.msra.mxu0 0.0
  %795 = vmatprep.subr.mxu0 0.0
  %796 = vmatpush1.msra.mxu0 0.0
  %797 = vmatprep.subr.mxu0 0.0
  %798 = vmatpush1.msra.mxu0 0.0
  %799 = vmatprep.subr.mxu0 0.0
  %800 = vmatpush1.msra.mxu0 0.0
  %801 = vmatprep.subr.mxu0 0.0
  %802 = vmatpush1.msra.mxu0 0.0
  %803 = vmatprep.subr.mxu0 0.0
  %804 = vmatpush1.msra.mxu0 0.0
  %805 = vmatprep.subr.mxu0 0.0
  %806 = vmatpush1.msra.mxu0 0.0
  %807 = vmatprep.subr.mxu0 0.0
  %808 = vmatpush1.msra.mxu0 0.0
  %809 = vmatprep.subr.mxu0 0.0
  %810 = vmatpush1.msra.mxu0 0.0
  %811 = vmatprep.subr.mxu0 0.0
  %812 = vmatpush1.msra.mxu0 0.0
  %813 = vmatprep.subr.mxu0 0.0
  %814 = vmatpush1.msra.mxu0 0.0
  %815 = vmatprep.subr.mxu0 0.0
  %816 = vmatpush1.msra.mxu0 0.0
  %817 = vmatprep.subr.mxu0 0.0
  %818 = vmatpush1.msra.mxu0 0.0
  %819 = vmatprep.subr.mxu0 0.0
  %820 = vmatpush1.msra.mxu0 0.0
  %821 = vmatprep.subr.mxu0 0.0
  %822 = vmatpush1.msra.mxu0 0.0
  %823 = vmatprep.subr.mxu0 0.0
  %824 = vmatpush1.msra.mxu0 0.0
  %825 = vmatprep.subr.mxu0 0.0
  %826 = vmatpush1.msra.mxu0 0.0
  %827 = vmatprep.subr.mxu0 0.0
  %828 = vmatpush1.msra.mxu0 0.0
  %829 = vmatprep.subr.mxu0 0.0
  %830 = vmatpush1.msra.mxu0 0.0
  %831 = vmatprep.subr.mxu0 0.0
  %832 = vmatpush1.msra.mxu0 0.0
  %833 = vmatprep.subr.mxu0 0.0
  %834 = vmatpush1.msra.mxu0 0.0
  %835 = vmatprep.subr.mxu0 0.0
  %836 = vmatpush1.msra.mxu0 0.0
  %837 = vmatprep.mubr.f32.mxu0 0.0
  %838 = vmatmul.mubr.f32.gmra.mrb[0].mxu0 %v771
  %v839 = vpop.f32.mrb[0].mxu0
  %v840 = vadd.f32 %v769, %v839
  %v841 = vpop.f32.mrb[0].mxu0
  %842 = vdwg.mxu0
  %843 = vmax.xlane.f32.xlu0 %v840
  %v844 = vpop.xlane.xlu0 %843
  %v845 = vsub.f32 %v840, %v844
  %v846 = vmul.f32 %v845, 1.442695
  %v847 = vpow.pop %v846
  %848 = vadd.xlane.f32.xlu0 %v847
  %v849 = vpop.xlane.xlu0 %848
  %v850 = vlog2.pop %v849
  %v851 = vmul.f32 %v850, 0.6931472
  %v852 = vsub.f32 %v845, %v851
  %853 = vst [vmem:[%s2] sm:$0xff] %v852
  // Predicated region
  $region10: #{_lambda_.1} parent=0 // pred_check
    _
  $region11: #{_lambda_.1} parent=0 // pred_check_branch
    %855 = sbr.rel (0) target = $region13
  $region12: #{_lambda_.1} parent=0 // pred_region
    _
  $region13: #{_lambda_.1} parent=0 // pred_fallthru
    _
  // Predicated region
  $region14: #{_lambda_.1} parent=0 // pred_check
    _
  $region15: #{_lambda_.1} parent=0 // pred_check_branch
    %857 = sbr.rel (0) target = $region17
  $region16: #{_lambda_.1} parent=0 // pred_region
    _
  $region17: #{_lambda_.1} parent=0 // pred_fallthru
    _

</llo_original>
